<compile_context>
chip_gen: v6e
topology: v6e:2x2x1
jax: 0.10.0
libtpu: 0.0.40
codegen_flags: <defaults>
</compile_context>

<pallas_src>
import jax
import jax.numpy as jnp
import numpy as np
from jax.experimental import pallas as pl
from jax.experimental.pallas import tpu as pltpu

_EPS = 1e-12  # torch.nn.functional.normalize default eps


def _round_up(x, m):
    return ((x + m - 1) // m) * m


def _l2_normalize(v, eps=_EPS):
    # Matches torch.nn.functional.normalize(v, dim=-1): v / max(||v||, eps).
    return v / jnp.maximum(jnp.linalg.norm(v, axis=-1, keepdims=True), eps)


def _prompt_cos_kernel(x_ref, e_ref, s_ref):
    """One (TM, TK) tile of cosine similarities between unit rows.

    x_ref: (TM, D) VMEM    e_ref: (D, TK) VMEM    s_ref: (TM, TK) VMEM (f32)

    Pure MXU work: inputs are pre-normalized (and optionally bf16) in the
    wrapper, so there is no VPU/XLU/EUP epilogue competing for slots here.
    """
    s_ref[...] = jnp.dot(x_ref[...], e_ref[...],
                         preferred_element_type=jnp.float32)


def _choose_tm(n, max_tm):
    if n <= 8:
        return 8
    # Split N into >= 2 parallel grid steps (v7x has 2 TensorCores; a 1-step
    # grid leaves half the chip idle there).
    tm = _round_up(-(-n // 2), 8)
    return min(tm, max_tm)


def pairwise_cos(x, embed, *, use_bf16=True, max_tm=256, max_tk=2048):
    """(N, K) cosine similarities between L2-normalized rows of x and embed."""
    n, d = x.shape
    k, d2 = embed.shape
    assert d == d2

    # Normalize once here (single fused XLA pass) instead of per grid step.
    xn = _l2_normalize(x.astype(jnp.float32))
    en = _l2_normalize(embed.astype(jnp.float32))
    if use_bf16:
        # bf16-native MXU on all generations; f32 accumulation in the kernel.
        xn = xn.astype(jnp.bfloat16)
        en = en.astype(jnp.bfloat16)
    en_t = en.T  # (D, K): canonical (M,K)x(K,N) contraction, no RHS transpose.
    itemsize = 2 if use_bf16 else 4

    # Tile sizes. TM sublane-aligned; TK lane-dense (multiple of 128 -> full
    # unmasked vst on the output slab).
    tm = _choose_tm(n, max_tm)
    n_pad = _round_up(n, tm)

    k128 = _round_up(max(k, 128), 128)
    # Resident-embed path when the whole (D, k_pad) slab fits a modest
    # (double-buffered) VMEM budget; otherwise tile K.
    if k128 <= max_tk and 2 * k128 * d * itemsize <= 8 * 1024 * 1024:
        tk = k128
    else:
        tk = _round_up(min(512, max_tk), 128)
    k_pad = _round_up(k, tk)

    # Zero-pad the contraction dim to a lane multiple when misaligned (exact:
    # zero columns contribute nothing to the dot; norms were taken pre-pad).
    d_pad = d if d % 128 == 0 else _round_up(d, 128)

    if n_pad != n or d_pad != d:
        xn = jnp.pad(xn, ((0, n_pad - n), (0, d_pad - d)))
    if k_pad != k or d_pad != d:
        en_t = jnp.pad(en_t, ((0, d_pad - d), (0, k_pad - k)))

    grid = (n_pad // tm, k_pad // tk)
    out = pl.pallas_call(
        _prompt_cos_kernel,
        out_shape=jax.ShapeDtypeStruct((n_pad, k_pad), jnp.float32),
        grid=grid,
        in_specs=[
            pl.BlockSpec((tm, d_pad), lambda i, j: (i, 0)),
            # When grid[1] == 1 the block index never changes -> embed is
            # DMA'd once and stays resident across all N steps.
            pl.BlockSpec((d_pad, tk), lambda i, j: (0, j)),
        ],
        out_specs=pl.BlockSpec((tm, tk), lambda i, j: (i, j)),
        compiler_params=pltpu.CompilerParams(
            # Independent output tiles -> both axes shard across TCs (v7x).
            dimension_semantics=("parallel", "parallel"),
            # Safe on v7x's 64 MiB physical VMEM; tiles above fit with large
            # headroom (don't port a v5e/v6e-tuned 128 MiB-era number here).
            vmem_limit_bytes=32 * 1024 * 1024,
        ),
    )(xn, en_t)
    return out[:n, :k]


def prompt_forward(inp, embed, weight=1.0, stop=float("-inf"), *,
                   use_bf16=True, max_tm=256, max_tk=2048):
    """Forward of Prompt: |w| * mean(0.5*arccos(s)^2 * sign(w))  (scalar)."""
    del stop  # only used inside ReplaceGrad's backward; forward ignores it
    s = pairwise_cos(inp, embed, use_bf16=use_bf16, max_tm=max_tm,
                     max_tk=max_tk)                           # (N, K), Pallas
    w = jnp.asarray(weight, jnp.float32)
    # 2*arcsin(||xn-en||/2)^2 == 0.5*arccos(<xn,en>)^2 exactly for unit rows.
    # TODO(synk): arccos has no guaranteed Pallas/Mosaic TPU lowering, so the
    # cheap O(N*K) elementwise tail + mean stays as fused XLA glue.
    dists = 0.5 * jnp.square(jnp.arccos(jnp.clip(s, -1.0, 1.0)))  # (N, K)
    dists = dists * jnp.sign(w)
    # replace_grad(dists, maximum(dists, stop)) forwards `dists` unchanged.
    return jnp.abs(w) * jnp.mean(dists)


def _ref_forward(inp, embed, weight):
    """Pure-JAX mirror of the PyTorch forward, for correctness checking."""
    xin = inp[:, None, :]
    emb = embed[None, :, :]
    xn = xin / jnp.maximum(jnp.linalg.norm(xin, axis=2, keepdims=True), _EPS)
    en = emb / jnp.maximum(jnp.linalg.norm(emb, axis=2, keepdims=True), _EPS)
    dists = jnp.linalg.norm(xn - en, axis=2) / 2.0
    dists = 2.0 * jnp.arcsin(dists) ** 2
    w = jnp.asarray(weight, jnp.float32)
    return jnp.abs(w) * jnp.mean(dists * jnp.sign(w))


if __name__ == "__main__":
    key = jax.random.PRNGKey(0)
    k1, k2, k3 = jax.random.split(key, 3)

    # N cutout embeddings of dim D (CLIP-like), K prompt embeddings.
    # N is deliberately not tile-aligned to exercise padding and the 2-step
    # (v7x-friendly) N grid.
    N, K, D = 40, 10, 512
    inp = jax.random.normal(k1, (N, D), dtype=jnp.float32)
    embed = jax.random.normal(k2, (K, D), dtype=jnp.float32)  # Prompt.embed
    weight = 0.5                                              # Prompt.weight

    ref = jax.block_until_ready(_ref_forward(inp, embed, weight))

    # Default path: bf16 MXU feed, resident embed (single K step).
    out = jax.block_until_ready(prompt_forward(inp, embed, weight))
    assert out.shape == () and out.dtype == jnp.float32
    np.testing.assert_allclose(np.asarray(out), np.asarray(ref),
                               rtol=1e-2, atol=1e-3)

    # Full-precision path: tight tolerance against the PyTorch-mirror ref.
    out_f32 = jax.block_until_ready(
        prompt_forward(inp, embed, weight, use_bf16=False))
    np.testing.assert_allclose(np.asarray(out_f32), np.asarray(ref),
                               rtol=2e-5, atol=1e-6)

    # Exercise the tiled-K path (multi-step j axis) with a larger prompt bank.
    K2 = 300
    embed2 = jax.random.normal(k3, (K2, D), dtype=jnp.float32)
    ref2 = jax.block_until_ready(_ref_forward(inp, embed2, weight))
    out2 = jax.block_until_ready(
        prompt_forward(inp, embed2, weight, use_bf16=False, max_tk=128))
    np.testing.assert_allclose(np.asarray(out2), np.asarray(ref2),
                               rtol=2e-5, atol=1e-6)

    print("KERNEL_OK")
</pallas_src>

<mosaic_0001>
module attributes {stable_mosaic.version = 11 : i64} {
  func.func @_prompt_cos_kernel(%arg0: i32, %arg1: i32, %arg2: memref<24x512xbf16, #tpu.memory_space<vmem>>, %arg3: memref<512x128xbf16, #tpu.memory_space<vmem>>, %arg4: memref<24x128xf32, #tpu.memory_space<vmem>>) attributes {dimension_semantics = [#tpu.dimension_semantics<parallel>, #tpu.dimension_semantics<parallel>], iteration_bounds = array<i64: 2, 1>, scalar_prefetch = 0 : i64, scratch_operands = 0 : i64, tpu.core_type = #tpu.core_type<tc>, window_params = [{transform_indices = @transform_0, window_bounds = array<i64: 24, 512>}, {transform_indices = @transform_1, window_bounds = array<i64: 512, 128>}, {transform_indices = @transform_2, window_bounds = array<i64: 24, 128>}]} {
    %c0 = arith.constant 0 : index
    %c0_0 = arith.constant 0 : index
    %0 = vector.load %arg2[%c0, %c0_0] : memref<24x512xbf16, #tpu.memory_space<vmem>>, vector<24x512xbf16>
    %c0_1 = arith.constant 0 : index
    %c0_2 = arith.constant 0 : index
    %1 = vector.load %arg3[%c0_1, %c0_2] : memref<512x128xbf16, #tpu.memory_space<vmem>>, vector<512x128xbf16>
    %cst = arith.constant dense<0.000000e+00> : vector<24x128xf32>
    %2 = tpu.matmul %0, %1, %cst {dimension_numbers = #tpu.dot_dimension_numbers<[1], [0], [0], [1], [0, 0, 1, 1], [], []>} : vector<24x512xbf16>, vector<512x128xbf16>, vector<24x128xf32> -> vector<24x128xf32>
    %c0_3 = arith.constant 0 : index
    %c0_4 = arith.constant 0 : index
    %3 = vector.load %arg4[%c0_3, %c0_4] : memref<24x128xf32, #tpu.memory_space<vmem>>, vector<24x128xf32>
    tpu.vector_store %arg4[%c0_3, %c0_4], %2 {strides = array<i32>} : memref<24x128xf32, #tpu.memory_space<vmem>>, vector<24x128xf32>,
    return
  }
  func.func @transform_0(%arg0: i32, %arg1: i32) -> (i32, i32) {
    %c0_i32 = arith.constant 0 : i32
    %c0_i32_0 = arith.constant 0 : i32
    return %arg0, %c0_i32 : i32, i32
  }
  func.func @transform_1(%arg0: i32, %arg1: i32) -> (i32, i32) {
    %c0_i32 = arith.constant 0 : i32
    %c0_i32_0 = arith.constant 0 : i32
    return %c0_i32, %arg1 : i32, i32
  }
  func.func @transform_2(%arg0: i32, %arg1: i32) -> (i32, i32) {
    %c0_i32 = arith.constant 0 : i32
    return %arg0, %arg1 : i32, i32
  }
}

</mosaic_0001>

<llo_original>
// kernel: tpu_custom_call.1
$region0: #{tpu_custom_call.1}
  #allocation0 [shape = 'u32[]', space=smem, size = 0x4, offset = 0x4, fixed_abs, tag = 'smem constant byte address 0x4 - core index']
  #allocation1 [shape = 'u32[144,128]{1,0:T(1,128)}', space=vmem, size = 0x12000, scoped, tag = 'internal scratch']
  %s0 = inlined_call_operand.hbm [shape: bf16[48,512], index: 0, kind: input, shape index: {}]
  %s1 = inlined_call_operand.hbm [shape: bf16[512,128], index: 1, kind: input, shape index: {}]
  %s2 = inlined_call_operand.hbm [shape: f32[48,128], index: 2, kind: output, shape index: {}]
  %s3 = sld [smem:[#allocation0]]
  $region49: #{tpu_custom_call.1} parent=0
    _
  %s5 = ssub.s32 1, %s3
  %s6 = scalar_select 0, %s5, %s3
  $region1: #{tpu_custom_call.1} parent=0
    #allocation2 [shape = 'u8[49152]{0}', space=vmem, size = 0xc000, scoped, tag = 'input window, operand 0']
    #allocation3 [shape = 's32[2]{0}', space=sflag, size = 0x8, scoped, tag = 'scoped memory for tpu_custom_call.1']
    #allocation4 [shape = 's32[2]{0}', space=sflag, size = 0x8, scoped, tag = 'scoped memory for tpu_custom_call.1']
    #allocation5 [shape = 'u8[131072]{0}', space=vmem, size = 0x20000, scoped, tag = 'input window, operand 1, single buffered']
    #allocation6 [shape = 's32[1]{0}', space=sflag, size = 0x4, scoped, tag = 'scoped memory for tpu_custom_call.1']
    #allocation7 [shape = 'u8[24576]{0}', space=vmem, size = 0x6000, scoped, tag = 'output window, operand 0']
    %7 = vsyncpa [#allocation3], 0
    %s8 = scalar_lea.sflag [#allocation3], 1
    %9 = vsyncpa %s8, 0
    %10 = vsyncpa [#allocation6], 0
    %11 = vsyncpa [#allocation4], 0
    %s12 = scalar_lea.sflag [#allocation4], 1
    %13 = vsyncpa %s12, 0
    loop: start=0, step=1, limit=4
    $region2: #{tpu_custom_call.1} parent=1 // loop_pre_header
      _
    $region3: #{tpu_custom_call.1} parent=1 // loop_header
      %s15 = sphi 0, %s19
      %p16 = scmp.ge.s32.totalorder %s15, 4
      %s22 = sphi 0, %s34
      %s23 = sphi 0, %s30
      %s24 = sphi 0, %s22
      %s25 = sphi 0, %s23
      %s26 = sphi 0, %s24
      %s27 = sphi 0, %s25
      %s37 = sphi 0, %s39
      %s40 = sphi 0, %s37
      %s41 = sphi 0, %s40
      %s57 = sphi 0, %s41
      %s63 = sphi 0, %s65
      %s66 = sphi 0, %s63
      %s67 = sphi 0, %s66
      %s83 = sphi 0, %s67
      %s91 = sphi 0, %s93
      %s94 = sphi 0, %s91
      %s95 = sphi 0, %s94
      %s111 = sphi 0, %s95
    $region4: #{tpu_custom_call.1} parent=1 // loop_header_branch
      %18 = sbr.rel (%p16) target = $region8
    $region5: #{tpu_custom_call.1} parent=1 // loop_body
      %s20 = ssub.s32 %s15, 1
      %s21 = ssub.s32 %s15, 2
      %s28 = sadd.s32 1, %s23
      %p29 = scmp.ge.s32.totalorder %s28, 1
      %s30 = scalar_select %p29, 0, %s28
      %s31 = sadd.s32 1, %s22
      %s32 = scalar_select %p29, %s31, %s22
      %p33 = scmp.ge.s32.totalorder %s32, 2
      %s34 = scalar_select %p33, 0, %s32
      %s35 = ssub.s32 %s22, %s34
      %p36 = scmp.eq.s32.totalorder %s35, 0
      %s38 = sadd.s32 %s37, 1
      %s39 = scalar_select %p36, %s37, %s38
      %p42 = pneg %p36
      %p43 = scmp.eq.s32.totalorder %s15, 1
      %p44 = por %p42, %p43
      %p45 = scmp.ne.s32.totalorder %s37, %s40
      %p46 = scmp.eq.s32.totalorder %s15, 0
      %p47 = por %p45, %p46
      %p48 = scmp.ne.s32.totalorder %s37, %s40
      %p49 = scmp.eq.s32.totalorder %s20, 1
      %p50 = por %p48, %p49
      %p51 = scmp.ne.s32.totalorder %s40, %s41
      %p52 = scmp.eq.s32.totalorder %s20, 0
      %p53 = por %p51, %p52
      %p54 = scmp.ne.s32.totalorder %s40, %s41
      %p55 = scmp.eq.s32.totalorder %s21, 1
      %p56 = por %p54, %p55
      %p58 = scmp.ne.s32.totalorder %s41, %s57
      %p59 = scmp.eq.s32.totalorder %s21, 0
      %p60 = por %p58, %p59
      %s61 = ssub.s32 %s23, %s30
      %p62 = scmp.eq.s32.totalorder %s61, 0
      %s64 = sadd.s32 %s63, 1
      %s65 = scalar_select %p62, %s63, %s64
      %p68 = pneg %p62
      %p69 = scmp.eq.s32.totalorder %s15, 1
      %p70 = por %p68, %p69
      %p71 = scmp.ne.s32.totalorder %s63, %s66
      %p72 = scmp.eq.s32.totalorder %s15, 0
      %p73 = por %p71, %p72
      %p74 = scmp.ne.s32.totalorder %s63, %s66
      %p75 = scmp.eq.s32.totalorder %s20, 1
      %p76 = por %p74, %p75
      %p77 = scmp.ne.s32.totalorder %s66, %s67
      %p78 = scmp.eq.s32.totalorder %s20, 0
      %p79 = por %p77, %p78
      %p80 = scmp.ne.s32.totalorder %s66, %s67
      %p81 = scmp.eq.s32.totalorder %s21, 1
      %p82 = por %p80, %p81
      %p84 = scmp.ne.s32.totalorder %s67, %s83
      %p85 = scmp.eq.s32.totalorder %s21, 0
      %p86 = por %p84, %p85
      %s87 = ssub.s32 %s22, %s34
      %s88 = ssub.s32 %s23, %s30
      %s89 = sor.u32 %s87, %s88
      %p90 = scmp.eq.s32.totalorder %s89, 0
      %s92 = sadd.s32 %s91, 1
      %s93 = scalar_select %p90, %s91, %s92
      %p96 = pneg %p90
      %p97 = scmp.eq.s32.totalorder %s15, 1
      %p98 = por %p96, %p97
      %p99 = scmp.ne.s32.totalorder %s91, %s94
      %p100 = scmp.eq.s32.totalorder %s15, 0
      %p101 = por %p99, %p100
      %p102 = scmp.ne.s32.totalorder %s91, %s94
      %p103 = scmp.eq.s32.totalorder %s20, 1
      %p104 = por %p102, %p103
      %p105 = scmp.ne.s32.totalorder %s94, %s95
      %p106 = scmp.eq.s32.totalorder %s20, 0
      %p107 = por %p105, %p106
      %p108 = scmp.ne.s32.totalorder %s94, %s95
      %p109 = scmp.eq.s32.totalorder %s21, 1
      %p110 = por %p108, %p109
      %p112 = scmp.ne.s32.totalorder %s95, %s111
      %p113 = scmp.eq.s32.totalorder %s21, 0
      %p114 = por %p112, %p113
      %p115 = scmp.le.s32.totalorder 1, %s15
      %p116 = scmp.lt.s32.totalorder %s15, 3
      %p117 = pnand %p115, %p116
      %p118 = pneg %p117
      // Predicated region
      $region9: #{tpu_custom_call.1} parent=5 // pred_check
        _
      $region10: #{tpu_custom_call.1} parent=5 // pred_check_branch
        %120 = sbr.rel (%p117) target = $region12
      $region11: #{tpu_custom_call.1} parent=5 // pred_region
        %s121 = ssub.s32 %s15, 1
        // Predicated region
        $region13: #{tpu_custom_call.1} parent=11 // pred_check
          %p122 = pneg %p79
        $region14: #{tpu_custom_call.1} parent=11 // pred_check_branch
          %124 = sbr.rel (%p122) target = $region16
        $region15: #{tpu_custom_call.1} parent=11 // pred_region
          %s126 = ssub.s32 4096, 4096
          %127 = vsyncadd [#allocation6], %s126
          %s128 = smul.addr %s25, 64
          %s129 = scalar_lea.hbm %s1, %s128
          %s130 = sshll.u32 [#allocation5], 4
          %s131 = int_to_ptr.vmem [resolvable:$true] %s130
          %136 = dma.hbm_to_vmem [thread:$0]  %s129, 4096, %s131, [#allocation6], 64, 64, 4
        $region16: #{tpu_custom_call.1} parent=11 // pred_fallthru
          _
      $region12: #{tpu_custom_call.1} parent=5 // pred_fallthru
        _
      %p137 = scmp.lt.s32.totalorder %s15, 2
      // Predicated region
      $region17: #{tpu_custom_call.1} parent=5 // pred_check
        %p138 = pneg %p137
      $region18: #{tpu_custom_call.1} parent=5 // pred_check_branch
        %140 = sbr.rel (%p138) target = $region20
      $region19: #{tpu_custom_call.1} parent=5 // pred_region
        // Predicated region
        $region21: #{tpu_custom_call.1} parent=19 // pred_check
          %p141 = pneg %p47
        $region22: #{tpu_custom_call.1} parent=19 // pred_check_branch
          %143 = sbr.rel (%p141) target = $region24
        $region23: #{tpu_custom_call.1} parent=19 // pred_region
          %s144 = sand.u32 %s37, 1
          %s145 = scalar_lea.sflag [#allocation3], %s144
          %s146 = sand.u32 %s37, 1
          %s147 = smul.addr %s146, 48
          %s148 = scalar_lea.vmem [#allocation2], %s147
          %s149 = smul.u32 3, %s22
          %s151 = ssub.s32 768, 768
          %152 = vsyncadd %s145, %s151
          %s153 = smul.addr %s149, 4
          %s154 = smul.addr %s153, 64
          %s155 = scalar_lea.hbm %s0, %s154
          %s156 = sshll.u32 %s148, 4
          %s157 = int_to_ptr.vmem [resolvable:$true] %s156
          %162 = dma.hbm_to_vmem [thread:$0]  %s155, 768, %s157, %s145, 256, 256, 16
        $region24: #{tpu_custom_call.1} parent=19 // pred_fallthru
          _
      $region20: #{tpu_custom_call.1} parent=5 // pred_fallthru
        _
      %p163 = scmp.le.s32.totalorder 1, %s15
      %p164 = scmp.lt.s32.totalorder %s15, 3
      %p165 = pnand %p163, %p164
      %p166 = pneg %p165
      // Predicated region
      $region25: #{tpu_custom_call.1} parent=5 // pred_check
        _
      $region26: #{tpu_custom_call.1} parent=5 // pred_check_branch
        %168 = sbr.rel (%p165) target = $region28
      $region27: #{tpu_custom_call.1} parent=5 // pred_region
        %s169 = ssub.s32 %s15, 1
        %s170 = sand.u32 %s40, 1
        %s171 = scalar_lea.sflag [#allocation3], %s170
        %s172 = sand.u32 %s40, 1
        %s173 = smul.addr %s172, 48
        %s174 = scalar_lea.vmem [#allocation2], %s173
        // Predicated region
        $region29: #{tpu_custom_call.1} parent=27 // pred_check
          %p175 = pneg %p53
        $region30: #{tpu_custom_call.1} parent=27 // pred_check_branch
          %177 = sbr.rel (%p175) target = $region32
        $region31: #{tpu_custom_call.1} parent=27 // pred_region
          %178 = dma.done %s171, 768
        $region32: #{tpu_custom_call.1} parent=27 // pred_fallthru
          _
        // Predicated region
        $region33: #{tpu_custom_call.1} parent=27 // pred_check
          %p179 = pneg %p79
        $region34: #{tpu_custom_call.1} parent=27 // pred_check_branch
          %181 = sbr.rel (%p179) target = $region36
        $region35: #{tpu_custom_call.1} parent=27 // pred_region
          %182 = dma.done [#allocation6], 4096
        $region36: #{tpu_custom_call.1} parent=27 // pred_fallthru
          _
        %s183 = sand.u32 %s40, 1
        %s184 = scalar_lea.sflag [#allocation3], %s183
        %s185 = sand.u32 %s40, 1
        %s186 = smul.addr %s185, 48
        %s187 = scalar_lea.vmem [#allocation2], %s186
        %p188 = pneg %p53
        %p189 = pneg %p50
        %p190 = pneg %p79
        %p191 = pneg %p76
        %p192 = pneg %p107
        %p193 = pneg %p104
        %s194 = sand.u32 %s94, 1
        %s195 = scalar_lea.sflag [#allocation4], %s194
        %s196 = sand.u32 %s94, 1
        %s197 = smul.addr %s196, 24
        %s198 = scalar_lea.vmem [#allocation7], %s197
        %s199 = smul.u32 3, %s24
        %s200 = smul.u32 3, %s24
        %v202 = vld [vmem:[%s174] sm:$0xff]
        %v203 = vld [vmem:[%s174 + $0x8] sm:$0xff]
        %v204 = vld [vmem:[%s174 + $0x10] sm:$0xff]
        %v205 = vld [vmem:[%s174 + $0x18] sm:$0xff]
        %v206 = vld [vmem:[%s174 + $0x20] sm:$0xff]
        %v207 = vld [vmem:[%s174 + $0x28] sm:$0xff]
        %v208 = vld [vmem:[#allocation5] sm:$0xf]
        %v209 = vld [vmem:[#allocation5 + $0x4] sm:$0xf]
        %v210 = vld [vmem:[#allocation5 + $0x8] sm:$0xf]
        %v211 = vld [vmem:[#allocation5 + $0xc] sm:$0xf]
        %v212 = vld [vmem:[#allocation5 + $0x10] sm:$0xf]
        %v213 = vld [vmem:[#allocation5 + $0x14] sm:$0xf]
        %v214 = vld [vmem:[#allocation5 + $0x18] sm:$0xf]
        %v215 = vld [vmem:[#allocation5 + $0x1c] sm:$0xf]
        %v216 = vld [vmem:[#allocation5 + $0x20] sm:$0xf]
        %v217 = vld [vmem:[#allocation5 + $0x24] sm:$0xf]
        %v218 = vld [vmem:[#allocation5 + $0x28] sm:$0xf]
        %v219 = vld [vmem:[#allocation5 + $0x2c] sm:$0xf]
        %v220 = vld [vmem:[#allocation5 + $0x30] sm:$0xf]
        %v221 = vld [vmem:[#allocation5 + $0x34] sm:$0xf]
        %v222 = vld [vmem:[#allocation5 + $0x38] sm:$0xf]
        %v223 = vld [vmem:[#allocation5 + $0x3c] sm:$0xf]
        %v224 = vld [vmem:[#allocation5 + $0x40] sm:$0xf]
        %v225 = vld [vmem:[#allocation5 + $0x44] sm:$0xf]
        %v226 = vld [vmem:[#allocation5 + $0x48] sm:$0xf]
        %v227 = vld [vmem:[#allocation5 + $0x4c] sm:$0xf]
        %v228 = vld [vmem:[#allocation5 + $0x50] sm:$0xf]
        %v229 = vld [vmem:[#allocation5 + $0x54] sm:$0xf]
        %v230 = vld [vmem:[#allocation5 + $0x58] sm:$0xf]
        %v231 = vld [vmem:[#allocation5 + $0x5c] sm:$0xf]
        %v232 = vld [vmem:[#allocation5 + $0x60] sm:$0xf]
        %v233 = vld [vmem:[#allocation5 + $0x64] sm:$0xf]
        %v234 = vld [vmem:[#allocation5 + $0x68] sm:$0xf]
        %v235 = vld [vmem:[#allocation5 + $0x6c] sm:$0xf]
        %v236 = vld [vmem:[#allocation5 + $0x70] sm:$0xf]
        %v237 = vld [vmem:[#allocation5 + $0x74] sm:$0xf]
        %v238 = vld [vmem:[#allocation5 + $0x78] sm:$0xf]
        %v239 = vld [vmem:[#allocation5 + $0x7c] sm:$0xf]
        %v240 = vld [vmem:[#allocation5 + $0x80] sm:$0xf]
        %v241 = vld [vmem:[#allocation5 + $0x84] sm:$0xf]
        %v242 = vld [vmem:[#allocation5 + $0x88] sm:$0xf]
        %v243 = vld [vmem:[#allocation5 + $0x8c] sm:$0xf]
        %v244 = vld [vmem:[#allocation5 + $0x90] sm:$0xf]
        %v245 = vld [vmem:[#allocation5 + $0x94] sm:$0xf]
        %v246 = vld [vmem:[#allocation5 + $0x98] sm:$0xf]
        %v247 = vld [vmem:[#allocation5 + $0x9c] sm:$0xf]
        %v248 = vld [vmem:[#allocation5 + $0xa0] sm:$0xf]
        %v249 = vld [vmem:[#allocation5 + $0xa4] sm:$0xf]
        %v250 = vld [vmem:[#allocation5 + $0xa8] sm:$0xf]
        %v251 = vld [vmem:[#allocation5 + $0xac] sm:$0xf]
        %v252 = vld [vmem:[#allocation5 + $0xb0] sm:$0xf]
        %v253 = vld [vmem:[#allocation5 + $0xb4] sm:$0xf]
        %v254 = vld [vmem:[#allocation5 + $0xb8] sm:$0xf]
        %v255 = vld [vmem:[#allocation5 + $0xbc] sm:$0xf]
        %v256 = vld [vmem:[#allocation5 + $0xc0] sm:$0xf]
        %v257 = vld [vmem:[#allocation5 + $0xc4] sm:$0xf]
        %v258 = vld [vmem:[#allocation5 + $0xc8] sm:$0xf]
        %v259 = vld [vmem:[#allocation5 + $0xcc] sm:$0xf]
        %v260 = vld [vmem:[#allocation5 + $0xd0] sm:$0xf]
        %v261 = vld [vmem:[#allocation5 + $0xd4] sm:$0xf]
        %v262 = vld [vmem:[#allocation5 + $0xd8] sm:$0xf]
        %v263 = vld [vmem:[#allocation5 + $0xdc] sm:$0xf]
        %v264 = vld [vmem:[#allocation5 + $0xe0] sm:$0xf]
        %v265 = vld [vmem:[#allocation5 + $0xe4] sm:$0xf]
        %v266 = vld [vmem:[#allocation5 + $0xe8] sm:$0xf]
        %v267 = vld [vmem:[#allocation5 + $0xec] sm:$0xf]
        %v268 = vld [vmem:[#allocation5 + $0xf0] sm:$0xf]
        %v269 = vld [vmem:[#allocation5 + $0xf4] sm:$0xf]
        %v270 = vld [vmem:[#allocation5 + $0xf8] sm:$0xf]
        %v271 = vld [vmem:[#allocation5 + $0xfc] sm:$0xf]
        %v278 = vunpack.c.l.b16 %v202
        %v279 = vunpack.c.h.b16 %v202
        %v280 = vunpack.c.l.b16 %v203
        %v281 = vunpack.c.h.b16 %v203
        %v282 = vunpack.c.l.b16 %v204
        %v283 = vunpack.c.h.b16 %v204
        %v284 = vunpack.c.l.b16 %v205
        %v285 = vunpack.c.h.b16 %v205
        %v286 = vunpack.c.l.b16 %v206
        %v287 = vunpack.c.h.b16 %v206
        %v288 = vunpack.c.l.b16 %v207
        %v289 = vunpack.c.h.b16 %v207
        %v290 = vpack.c.b16 %v282, %v278
        %v291 = vpack.c.b16 %v283, %v279
        %v292 = vpack.c.b16 %v284, %v280
        %v293 = vpack.c.b16 %v285, %v281
        %v294 = vpack.c.b16 %v286, %v286
        %v295 = vpack.c.b16 %v287, %v287
        %v296 = vpack.c.b16 %v288, %v288
        %v297 = vpack.c.b16 %v289, %v289
        %v370 = vunpack.c.l.b16 %v208
        %v371 = vunpack.c.l.b16 %v209
        %v372 = vunpack.c.l.b16 %v210
        %v373 = vunpack.c.l.b16 %v211
        %v374 = vunpack.c.l.b16 %v212
        %v375 = vunpack.c.l.b16 %v213
        %v376 = vunpack.c.l.b16 %v214
        %v377 = vunpack.c.l.b16 %v215
        %v378 = vunpack.c.l.b16 %v216
        %v379 = vunpack.c.l.b16 %v217
        %v380 = vunpack.c.l.b16 %v218
        %v381 = vunpack.c.l.b16 %v219
        %v382 = vunpack.c.l.b16 %v220
        %v383 = vunpack.c.l.b16 %v221
        %v384 = vunpack.c.l.b16 %v222
        %v385 = vunpack.c.l.b16 %v223
        %v386 = vunpack.c.l.b16 %v224
        %v387 = vunpack.c.l.b16 %v225
        %v388 = vunpack.c.l.b16 %v226
        %v389 = vunpack.c.l.b16 %v227
        %v390 = vunpack.c.l.b16 %v228
        %v391 = vunpack.c.l.b16 %v229
        %v392 = vunpack.c.l.b16 %v230
        %v393 = vunpack.c.l.b16 %v231
        %v394 = vunpack.c.l.b16 %v232
        %v395 = vunpack.c.l.b16 %v233
        %v396 = vunpack.c.l.b16 %v234
        %v397 = vunpack.c.l.b16 %v235
        %v398 = vunpack.c.l.b16 %v236
        %v399 = vunpack.c.l.b16 %v237
        %v400 = vunpack.c.l.b16 %v238
        %v401 = vunpack.c.l.b16 %v239
        %v402 = vunpack.c.l.b16 %v240
        %v403 = vunpack.c.l.b16 %v241
        %v404 = vunpack.c.l.b16 %v242
        %v405 = vunpack.c.l.b16 %v243
        %v406 = vunpack.c.l.b16 %v244
        %v407 = vunpack.c.l.b16 %v245
        %v408 = vunpack.c.l.b16 %v246
        %v409 = vunpack.c.l.b16 %v247
        %v410 = vunpack.c.l.b16 %v248
        %v411 = vunpack.c.l.b16 %v249
        %v412 = vunpack.c.l.b16 %v250
        %v413 = vunpack.c.l.b16 %v251
        %v414 = vunpack.c.l.b16 %v252
        %v415 = vunpack.c.l.b16 %v253
        %v416 = vunpack.c.l.b16 %v254
        %v417 = vunpack.c.l.b16 %v255
        %v418 = vunpack.c.l.b16 %v256
        %v419 = vunpack.c.l.b16 %v257
        %v420 = vunpack.c.l.b16 %v258
        %v421 = vunpack.c.l.b16 %v259
        %v422 = vunpack.c.l.b16 %v260
        %v423 = vunpack.c.l.b16 %v261
        %v424 = vunpack.c.l.b16 %v262
        %v425 = vunpack.c.l.b16 %v263
        %v426 = vunpack.c.l.b16 %v264
        %v427 = vunpack.c.l.b16 %v265
        %v428 = vunpack.c.l.b16 %v266
        %v429 = vunpack.c.l.b16 %v267
        %v430 = vunpack.c.l.b16 %v268
        %v431 = vunpack.c.l.b16 %v269
        %v432 = vunpack.c.l.b16 %v270
        %v433 = vunpack.c.l.b16 %v271
        %v434 = vpack.c.b16 %v371, %v370
        %v435 = vpack.c.b16 %v373, %v372
        %v436 = vpack.c.b16 %v375, %v374
        %v437 = vpack.c.b16 %v377, %v376
        %v438 = vpack.c.b16 %v379, %v378
        %v439 = vpack.c.b16 %v381, %v380
        %v440 = vpack.c.b16 %v383, %v382
        %v441 = vpack.c.b16 %v385, %v384
        %v442 = vpack.c.b16 %v387, %v386
        %v443 = vpack.c.b16 %v389, %v388
        %v444 = vpack.c.b16 %v391, %v390
        %v445 = vpack.c.b16 %v393, %v392
        %v446 = vpack.c.b16 %v395, %v394
        %v447 = vpack.c.b16 %v397, %v396
        %v448 = vpack.c.b16 %v399, %v398
        %v449 = vpack.c.b16 %v401, %v400
        %v450 = vpack.c.b16 %v403, %v402
        %v451 = vpack.c.b16 %v405, %v404
        %v452 = vpack.c.b16 %v407, %v406
        %v453 = vpack.c.b16 %v409, %v408
        %v454 = vpack.c.b16 %v411, %v410
        %v455 = vpack.c.b16 %v413, %v412
        %v456 = vpack.c.b16 %v415, %v414
        %v457 = vpack.c.b16 %v417, %v416
        %v458 = vpack.c.b16 %v419, %v418
        %v459 = vpack.c.b16 %v421, %v420
        %v460 = vpack.c.b16 %v423, %v422
        %v461 = vpack.c.b16 %v425, %v424
        %v462 = vpack.c.b16 %v427, %v426
        %v463 = vpack.c.b16 %v429, %v428
        %v464 = vpack.c.b16 %v431, %v430
        %v465 = vpack.c.b16 %v433, %v432
        %498 = vmatprep.subr.bf16.mxu0 0
        %499 = vmatpush1.bf16.msra.mxu0 %v441
        %500 = vmatprep.subr.bf16.mxu0 0
        %501 = vmatpush1.bf16.msra.mxu0 %v440
        %502 = vmatprep.subr.bf16.mxu0 0
        %503 = vmatpush1.bf16.msra.mxu0 %v439
        %504 = vmatprep.subr.bf16.mxu0 0
        %505 = vmatpush1.bf16.msra.mxu0 %v438
        %506 = vmatprep.subr.bf16.mxu0 0
        %507 = vmatpush1.bf16.msra.mxu0 %v437
        %508 = vmatprep.subr.bf16.mxu0 0
        %509 = vmatpush1.bf16.msra.mxu0 %v436
        %510 = vmatprep.subr.bf16.mxu0 0
        %511 = vmatpush1.bf16.msra.mxu0 %v435
        %512 = vmatprep.subr.bf16.mxu0 0
        %513 = vmatpush1.bf16.msra.mxu0 %v434
        %514 = vmatprep.subr.bf16.mxu0 0
        %515 = vmatpush2.bf16.msra.mxu0 %v449
        %516 = vmatprep.subr.bf16.mxu0 0
        %517 = vmatpush2.bf16.msra.mxu0 %v448
        %518 = vmatprep.subr.bf16.mxu0 0
        %519 = vmatpush2.bf16.msra.mxu0 %v447
        %520 = vmatprep.subr.bf16.mxu0 0
        %521 = vmatpush2.bf16.msra.mxu0 %v446
        %522 = vmatprep.subr.bf16.mxu0 0
        %523 = vmatpush2.bf16.msra.mxu0 %v445
        %524 = vmatprep.subr.bf16.mxu0 0
        %525 = vmatpush2.bf16.msra.mxu0 %v444
        %526 = vmatprep.subr.bf16.mxu0 0
        %527 = vmatpush2.bf16.msra.mxu0 %v443
        %528 = vmatprep.subr.bf16.mxu0 0
        %529 = vmatpush2.bf16.msra.mxu0 %v442
        %530 = vmatprep.mubr.bf16.mxu0 %v291
        %531 = vmatmul.mubr.bf16.gmra.mxu0 %v290
        %v532 = vpop.f32.mrf.mxu0
        %v533 = vadd.f32 0.0, %v532
        %v534 = vpop.f32.mrf.mxu0
        %v535 = vpop.f32.mrf.mxu0
        %v536 = vadd.f32 0.0, %v535
        %v537 = vpop.f32.mrf.mxu0
        %538 = vmatprep.mubr.bf16.mxu0 %v295
        %539 = vmatmul.mubr.bf16.gmra.mxu0 %v294
        %v540 = vpop.f32.mrf.mxu0
        %v541 = vadd.f32 0.0, %v540
        %v542 = vpop.f32.mrf.mxu0
        %v543 = vpop.f32.mrf.mxu0
        %v544 = vpop.f32.mrf.mxu0
        %545 = vdwg.mxu0
        %546 = vmatprep.subr.bf16.mxu0 0
        %547 = vmatpush1.bf16.msra.mxu0 %v457
        %548 = vmatprep.subr.bf16.mxu0 0
        %549 = vmatpush1.bf16.msra.mxu0 %v456
        %550 = vmatprep.subr.bf16.mxu0 0
        %551 = vmatpush1.bf16.msra.mxu0 %v455
        %552 = vmatprep.subr.bf16.mxu0 0
        %553 = vmatpush1.bf16.msra.mxu0 %v454
        %554 = vmatprep.subr.bf16.mxu0 0
        %555 = vmatpush1.bf16.msra.mxu0 %v453
        %556 = vmatprep.subr.bf16.mxu0 0
        %557 = vmatpush1.bf16.msra.mxu0 %v452
        %558 = vmatprep.subr.bf16.mxu0 0
        %559 = vmatpush1.bf16.msra.mxu0 %v451
        %560 = vmatprep.subr.bf16.mxu0 0
        %561 = vmatpush1.bf16.msra.mxu0 %v450
        %562 = vmatprep.subr.bf16.mxu0 0
        %563 = vmatpush2.bf16.msra.mxu0 %v465
        %564 = vmatprep.subr.bf16.mxu0 0
        %565 = vmatpush2.bf16.msra.mxu0 %v464
        %566 = vmatprep.subr.bf16.mxu0 0
        %567 = vmatpush2.bf16.msra.mxu0 %v463
        %568 = vmatprep.subr.bf16.mxu0 0
        %569 = vmatpush2.bf16.msra.mxu0 %v462
        %570 = vmatprep.subr.bf16.mxu0 0
        %571 = vmatpush2.bf16.msra.mxu0 %v461
        %572 = vmatprep.subr.bf16.mxu0 0
        %573 = vmatpush2.bf16.msra.mxu0 %v460
        %574 = vmatprep.subr.bf16.mxu0 0
        %575 = vmatpush2.bf16.msra.mxu0 %v459
        %576 = vmatprep.subr.bf16.mxu0 0
        %577 = vmatpush2.bf16.msra.mxu0 %v458
        %578 = vmatprep.mubr.bf16.mxu0 %v293
        %579 = vmatmul.mubr.bf16.gmra.mxu0 %v292
        %v580 = vpop.f32.mrf.mxu0
        %v581 = vadd.f32 %v533, %v580
        %v582 = vpop.f32.mrf.mxu0
        %v583 = vpop.f32.mrf.mxu0
        %v584 = vadd.f32 %v536, %v583
        %v585 = vpop.f32.mrf.mxu0
        %586 = vmatprep.mubr.bf16.mxu0 %v297
        %587 = vmatmul.mubr.bf16.gmra.mxu0 %v296
        %v588 = vpop.f32.mrf.mxu0
        %v589 = vadd.f32 %v541, %v588
        %v590 = vpop.f32.mrf.mxu0
        %v591 = vpop.f32.mrf.mxu0
        %v592 = vpop.f32.mrf.mxu0
        %593 = vdwg.mxu0
        %594 = vst [vmem:[%s198] sm:$0xff] %v581
        %595 = vst [vmem:[%s198 + $0x8] sm:$0xff] %v584
        %596 = vst [vmem:[%s198 + $0x10] sm:$0xff] %v589
        %s597 = sand.u32 %s94, 1
        %s598 = scalar_lea.sflag [#allocation4], %s597
        %s599 = sand.u32 %s94, 1
        %s600 = smul.addr %s599, 24
        %s601 = scalar_lea.vmem [#allocation7], %s600
        // Predicated region
        $region37: #{tpu_custom_call.1} parent=27 // pred_check
          %p602 = pneg %p104
        $region38: #{tpu_custom_call.1} parent=27 // pred_check_branch
          %604 = sbr.rel (%p602) target = $region40
        $region39: #{tpu_custom_call.1} parent=27 // pred_region
          %s605 = smul.u32 3, %s24
          %s607 = ssub.s32 384, 384
          %608 = vsyncadd %s598, %s607
          %s609 = sadd.s32 %s25, %s605
          %s610 = smul.addr %s609, 128
          %s611 = scalar_lea.hbm %s2, %s610
          %s612 = sshll.u32 %s601, 4
          %s613 = int_to_ptr.vmem [resolvable:$true] %s612
          %618 = dma.vmem_to_hbm [thread:$0]  %s613, 384, %s611, %s598, 128, 128, 8
        $region40: #{tpu_custom_call.1} parent=27 // pred_fallthru
          _
      $region28: #{tpu_custom_call.1} parent=5 // pred_fallthru
        _
      %p619 = scmp.le.s32.totalorder 2, %s15
      // Predicated region
      $region41: #{tpu_custom_call.1} parent=5 // pred_check
        %p620 = pneg %p619
      $region42: #{tpu_custom_call.1} parent=5 // pred_check_branch
        %622 = sbr.rel (%p620) target = $region44
      $region43: #{tpu_custom_call.1} parent=5 // pred_region
        %s623 = ssub.s32 %s15, 2
        // Predicated region
        $region45: #{tpu_custom_call.1} parent=43 // pred_check
          %p624 = pneg %p110
        $region46: #{tpu_custom_call.1} parent=43 // pred_check_branch
          %626 = sbr.rel (%p624) target = $region48
        $region47: #{tpu_custom_call.1} parent=43 // pred_region
          %s627 = sand.u32 %s95, 1
          %s628 = scalar_lea.sflag [#allocation4], %s627
          %s629 = sand.u32 %s95, 1
          %s630 = smul.addr %s629, 24
          %s631 = scalar_lea.vmem [#allocation7], %s630
          %632 = dma.done %s628, 384
        $region48: #{tpu_custom_call.1} parent=43 // pred_fallthru
          _
      $region44: #{tpu_custom_call.1} parent=5 // pred_fallthru
        _
    $region6: #{tpu_custom_call.1} parent=1 // loop_footer
      %s19 = sadd.s32 1, %s15
    $region7: #{tpu_custom_call.1} parent=1 // loop_footer_branch
      %14 = sbr.rel target = $region3
    $region8: #{tpu_custom_call.1} parent=1 // loop_exit
      _
    %633 = vsyncpa [#allocation3], 1
    %s634 = scalar_lea.sflag [#allocation3], 1
    %635 = vsyncpa %s634, 1
    %636 = vsyncpa [#allocation6], 1
    %637 = vsyncpa [#allocation4], 1
    %s638 = scalar_lea.sflag [#allocation4], 1
    %639 = vsyncpa %s638, 1

</llo_original>
